<compile_context>
chip_gen: v7x
topology: tpu7x:2x2x1
jax: 0.10.0
libtpu: 0.0.40
codegen_flags: <defaults>
</compile_context>

<pallas_src>
import math
import jax
import jax.numpy as jnp
import numpy as np
from jax.experimental import pallas as pl
from jax.experimental.pallas import tpu as pltpu


_GELU_C = math.sqrt(2.0 / math.pi)


def _round_up(x, m):
    return ((x + m - 1) // m) * m


def _cdiv(a, b):
    return (a + b - 1) // b


def _device_kind():
    try:
        return jax.devices()[0].device_kind.lower()
    except Exception:
        return ""


def _chip_defaults():
    """Per-generation tiling defaults: row tile, hidden chunk, lane padding,
    scoped-VMEM request, weight pipeline depth, min #row tiles (megacore)."""
    kind = _device_kind()
    if "v7" in kind:   # 2 TC/chip, 64 MiB VMEM, ~310 flop/byte balance point
        return dict(tm=512, th=256, lane=256, vmem=44 * 1024 * 1024,
                    wbuf=2, min_row_tiles=2)
    if "v6" in kind:   # 1 TC, 128 MiB VMEM, ~650 flop/byte balance point
        return dict(tm=1024, th=512, lane=256, vmem=96 * 1024 * 1024,
                    wbuf=2, min_row_tiles=1)
    if "v5" in kind and ("lite" in kind or "5e" in kind):
        return dict(tm=256, th=512, lane=128, vmem=48 * 1024 * 1024,
                    wbuf=3, min_row_tiles=1)
    return dict(tm=512, th=512, lane=128, vmem=48 * 1024 * 1024,
                wbuf=2, min_row_tiles=1)


# --------------------------------------------------------------------------
# Kernels
# --------------------------------------------------------------------------
def _gelu_tanh_f32(h):
    # 0.5*h*(1 + tanh(sqrt(2/pi) * (h + 0.044715*h^3))), h is f32.
    u = h * h
    return 0.5 * h * (1.0 + jnp.tanh(_GELU_C * (h * (1.0 + 0.044715 * u))))


def _mlp_kernel_fused(x_ref, w1_ref, b1_ref, w2_ref, b2_ref, o_ref):
    # Whole hidden dim resident: single fused c_fc -> GELU -> c_proj per row tile.
    h = jnp.dot(x_ref[...], w1_ref[...], preferred_element_type=jnp.float32)
    h = h + b1_ref[...]
    g = _gelu_tanh_f32(h)
    y = jnp.dot(g.astype(w2_ref.dtype), w2_ref[...],
                preferred_element_type=jnp.float32)
    o_ref[...] = (y + b2_ref[...]).astype(o_ref.dtype)


def _mlp_kernel_chunked(x_ref, w1_ref, b1_ref, w2_ref, b2_ref, o_ref, acc_ref):
    # Hidden dim chunked on grid axis 1; acc_ref is a persistent f32 accumulator.
    k = pl.program_id(1)

    @pl.when(k == 0)
    def _init():
        acc_ref[...] = jnp.zeros_like(acc_ref)

    h = jnp.dot(x_ref[...], w1_ref[...], preferred_element_type=jnp.float32)
    h = h + b1_ref[...]
    g = _gelu_tanh_f32(h)
    acc_ref[...] += jnp.dot(g.astype(w2_ref.dtype), w2_ref[...],
                            preferred_element_type=jnp.float32)

    @pl.when(k == pl.num_programs(1) - 1)
    def _finalize():
        o_ref[...] = (acc_ref[...] + b2_ref[...]).astype(o_ref.dtype)


# --------------------------------------------------------------------------
# Wrapper
# --------------------------------------------------------------------------
def prepare_mlp_params(w1, b1, w2, b2, *, compute_dtype=jnp.bfloat16,
                       lane_multiple=None):
    """One-time pad + cast of the MLP parameters (keep out of the hot path).

    w1: (C, 4C), b1: (4C,), w2: (4C, C), b2: (C,) in (in_features, out_features)
    layout (transpose of nn.Linear.weight). Biases are kept in f32.
    """
    C, H = w1.shape
    assert w2.shape == (H, C) and b1.shape == (H,) and b2.shape == (C,)
    if lane_multiple is None:
        lane_multiple = _chip_defaults()["lane"]
    Cp = _round_up(C, lane_multiple)
    Hp = _round_up(H, lane_multiple)
    # Zero padding is semantics-preserving (padded features contribute 0).
    w1p = jnp.pad(w1.astype(compute_dtype), ((0, Cp - C), (0, Hp - H)))
    w2p = jnp.pad(w2.astype(compute_dtype), ((0, Hp - H), (0, Cp - C)))
    b1p = jnp.pad(b1.astype(jnp.float32), (0, Hp - H)).reshape(1, Hp)
    b2p = jnp.pad(b2.astype(jnp.float32), (0, Cp - C)).reshape(1, Cp)
    return w1p, b1p, w2p, b2p


def _pick_chunk(Hp, th):
    """Largest multiple of 128 that divides Hp and is <= max(th, 128)."""
    best, d, cap = 128, 128, max(th, 128)
    while d <= Hp:
        if Hp % d == 0 and d <= cap:
            best = d
        d += 128
    return best


def _vmem_estimate(tm, th, Cp, cbytes, obytes, wbuf, chunked):
    acc = tm * Cp * 4 if chunked else 0
    x_b = 2 * tm * Cp * cbytes            # double-buffered input rows
    o_b = 2 * tm * Cp * obytes            # double-buffered output rows
    w_b = wbuf * 2 * Cp * th * cbytes     # W1 + W2 chunks
    b_b = wbuf * (th + Cp) * 4            # bias chunks
    return acc + x_b + o_b + w_b + b_b


def _weight_spec(shape, index_map, buffers):
    """Weight-chunk BlockSpec; deeper pipeline on v5e if supported."""
    if buffers != 2:
        try:
            return pl.BlockSpec(shape, index_map, pipeline_mode=pl.Buffered(buffers))
        except TypeError:   # older BlockSpec without pipeline_mode
            pass
    return pl.BlockSpec(shape, index_map)


def mlp_forward_prepared(x, w1p, b1p, w2p, b2p, *, tm=None, th=None,
                         out_dtype=None, vmem_limit_bytes=None,
                         weight_buffers=None,
                         fuse_weight_bytes=8 * 1024 * 1024):
    """GPT MLP forward with pre-padded / pre-cast params from prepare_mlp_params.

    x: (..., C). Output dtype defaults to the weight compute dtype (bf16 by
    default) to halve HBM writeback; pass out_dtype=jnp.float32 to match a
    full-precision PyTorch reference.
    """
    lead, C = x.shape[:-1], x.shape[-1]
    M = int(math.prod(lead)) if lead else 1
    Cp, Hp = w1p.shape
    assert w2p.shape == (Hp, Cp) and b1p.shape == (1, Hp) and b2p.shape == (1, Cp)
    assert C <= Cp and Cp % 128 == 0 and Hp % 128 == 0, "use prepare_mlp_params"

    d = _chip_defaults()
    tm = d["tm"] if tm is None else tm
    th = d["th"] if th is None else th
    vmem_limit_bytes = d["vmem"] if vmem_limit_bytes is None else vmem_limit_bytes
    weight_buffers = d["wbuf"] if weight_buffers is None else weight_buffers

    compute_dtype = w1p.dtype
    if out_dtype is None:
        out_dtype = compute_dtype
    cbytes = np.dtype(compute_dtype).itemsize
    obytes = np.dtype(out_dtype).itemsize

    # Hidden chunk / fused-path decision.
    th_eff = _pick_chunk(Hp, th)
    weight_bytes = (w1p.size + w2p.size) * cbytes
    fused = (Hp <= th_eff) or (weight_bytes <= fuse_weight_bytes)
    if fused:
        th_eff = Hp
    wbuf_eff = 2 if fused else weight_buffers

    # Row tile: multiple of 8, capped by padded token count, minimal row padding.
    tm_eff = max(8, _round_up(min(tm, _round_up(M, 8)), 8))
    # v7x megacore: make sure the "parallel" row axis has >= 2 tiles if possible.
    while d["min_row_tiles"] > 1 and _cdiv(M, tm_eff) < d["min_row_tiles"] and tm_eff > 8:
        tm_eff = max(8, _round_up(tm_eff // 2, 8))
    # Shrink rows until the estimated footprint fits the scoped-VMEM budget.
    while tm_eff > 8 and _vmem_estimate(tm_eff, th_eff, Cp, cbytes, obytes,
                                        wbuf_eff, not fused) > 0.75 * vmem_limit_bytes:
        tm_eff = max(8, _round_up(tm_eff // 2, 8))
    Mp = _round_up(M, tm_eff)

    # Activation pad/cast (the only per-call data movement outside the kernel).
    x2 = jnp.pad(x.reshape(M, C).astype(compute_dtype),
                 ((0, Mp - M), (0, Cp - C)))

    if fused:
        grid = (Mp // tm_eff,)
        in_specs = [
            pl.BlockSpec((tm_eff, Cp), lambda i: (i, 0)),   # x row tile
            pl.BlockSpec((Cp, Hp), lambda i: (0, 0)),       # W1 (resident)
            pl.BlockSpec((1, Hp), lambda i: (0, 0)),        # b1
            pl.BlockSpec((Hp, Cp), lambda i: (0, 0)),       # W2 (resident)
            pl.BlockSpec((1, Cp), lambda i: (0, 0)),        # b2
        ]
        out_specs = pl.BlockSpec((tm_eff, Cp), lambda i: (i, 0))
        scratch = []
        kernel = _mlp_kernel_fused
        dims = ("parallel",)
    else:
        grid = (Mp // tm_eff, Hp // th_eff)
        in_specs = [
            pl.BlockSpec((tm_eff, Cp), lambda i, k: (i, 0)),               # x rows (resident over k)
            _weight_spec((Cp, th_eff), lambda i, k: (0, k), wbuf_eff),     # W1 column chunk
            pl.BlockSpec((1, th_eff), lambda i, k: (0, k)),                # b1 chunk
            _weight_spec((th_eff, Cp), lambda i, k: (k, 0), wbuf_eff),     # W2 row chunk
            pl.BlockSpec((1, Cp), lambda i, k: (0, 0)),                    # b2
        ]
        out_specs = pl.BlockSpec((tm_eff, Cp), lambda i, k: (i, 0))
        scratch = [pltpu.VMEM((tm_eff, Cp), jnp.float32)]
        kernel = _mlp_kernel_chunked
        dims = ("parallel", "arbitrary")

    out = pl.pallas_call(
        kernel,
        out_shape=jax.ShapeDtypeStruct((Mp, Cp), out_dtype),
        grid_spec=pltpu.PrefetchScalarGridSpec(
            num_scalar_prefetch=0,
            grid=grid,
            in_specs=in_specs,
            out_specs=out_specs,
            scratch_shapes=scratch,
        ),
        compiler_params=pltpu.CompilerParams(
            dimension_semantics=dims,
            vmem_limit_bytes=vmem_limit_bytes,
        ),
    )(x2, w1p, b1p, w2p, b2p)

    return out[:M, :C].reshape(*lead, C)


def mlp_forward(x, w1, b1, w2, b2, *, compute_dtype=jnp.bfloat16, **kwargs):
    """Convenience wrapper: pads/casts weights per call (prefer prepare_mlp_params
    + mlp_forward_prepared in real training/serving loops)."""
    prepared = prepare_mlp_params(w1, b1, w2, b2, compute_dtype=compute_dtype)
    return mlp_forward_prepared(x, *prepared, **kwargs)


# --------------------------------------------------------------------------
# Reference + self-test
# --------------------------------------------------------------------------
def _reference(x, w1, b1, w2, b2):
    h = x @ w1 + b1
    g = 0.5 * h * (1.0 + jnp.tanh(_GELU_C * (h + 0.044715 * h ** 3)))
    return g @ w2 + b2


def _make_params(key, C, H):
    k1, kb1, k2, kb2 = jax.random.split(key, 4)
    w1 = jax.random.uniform(k1, (C, H), minval=-1.0, maxval=1.0) / math.sqrt(C)
    b1 = jax.random.uniform(kb1, (H,), minval=-1.0, maxval=1.0) / math.sqrt(C)
    w2 = jax.random.uniform(k2, (H, C), minval=-1.0, maxval=1.0) / math.sqrt(H)
    b2 = jax.random.uniform(kb2, (C,), minval=-1.0, maxval=1.0) / math.sqrt(H)
    return w1, b1, w2, b2


if __name__ == "__main__":
    key = jax.random.PRNGKey(0)

    # --- Small config per the module spec: n_embed=32, bias=True, dropout=0.0 (eval) ---
    B, T, C = 2, 8, 32
    H = 4 * C
    kx, kp, key = jax.random.split(key, 3)
    x = jax.random.normal(kx, (B, T, C), dtype=jnp.float32)
    w1, b1, w2, b2 = _make_params(kp, C, H)
    y_ref = _reference(x, w1, b1, w2, b2)

    # f32 compute path (fused, weights fully resident) — tight tolerance.
    y32 = jax.block_until_ready(
        mlp_forward(x, w1, b1, w2, b2,
                    compute_dtype=jnp.float32, out_dtype=jnp.float32))
    assert y32.shape == (B, T, C)
    assert jnp.allclose(y32, y_ref, atol=1e-5, rtol=1e-5), "mismatch (small f32)"

    # Default path: bf16 weights/activations (pre-padded once), f32 accumulate.
    prepared = prepare_mlp_params(w1, b1, w2, b2)
    y_bf16 = jax.block_until_ready(mlp_forward_prepared(x, *prepared))
    assert jnp.allclose(y_bf16.astype(jnp.float32), y_ref,
                        atol=1e-1, rtol=1e-1), "mismatch (small bf16)"

    # --- Medium config forcing the chunked hidden-reduction path (both grid axes) ---
    B2, T2, C2 = 2, 128, 256
    H2 = 4 * C2
    kx2, kp2, key = jax.random.split(key, 3)
    x2 = jax.random.normal(kx2, (B2, T2, C2), dtype=jnp.float32)
    p2 = _make_params(kp2, C2, H2)
    y2_ref = _reference(x2, *p2)

    y2 = jax.block_until_ready(
        mlp_forward(x2, *p2, compute_dtype=jnp.float32, out_dtype=jnp.float32,
                    tm=64, th=256, fuse_weight_bytes=0))
    assert jnp.allclose(y2, y2_ref, atol=1e-4, rtol=1e-4), "mismatch (chunked f32)"

    y2_bf16 = jax.block_until_ready(
        mlp_forward(x2, *p2, th=256, fuse_weight_bytes=0))
    assert jnp.allclose(y2_bf16.astype(jnp.float32), y2_ref,
                        atol=1e-1, rtol=1e-1), "mismatch (chunked bf16)"

    print("KERNEL_OK")
</pallas_src>

<mosaic_0001>
module attributes {stable_mosaic.version = 11 : i64} {
  func.func @_mlp_kernel_fused(%arg0: i32, %arg1: memref<16x128xf32, #tpu.memory_space<vmem>>, %arg2: memref<128x128xf32, #tpu.memory_space<vmem>>, %arg3: memref<1x128xf32, #tpu.memory_space<vmem>>, %arg4: memref<128x128xf32, #tpu.memory_space<vmem>>, %arg5: memref<1x128xf32, #tpu.memory_space<vmem>>, %arg6: memref<16x128xf32, #tpu.memory_space<vmem>>) attributes {dimension_semantics = [#tpu.dimension_semantics<parallel>], iteration_bounds = array<i64: 1>, scalar_prefetch = 0 : i64, scratch_operands = 0 : i64, tpu.core_type = #tpu.core_type<tc>, window_params = [{transform_indices = @transform_0, window_bounds = array<i64: 16, 128>}, {pipeline_mode = #tpu.pipeline_mode<synchronous>, transform_indices = @transform_1, window_bounds = array<i64: 128, 128>}, {pipeline_mode = #tpu.pipeline_mode<synchronous>, transform_indices = @transform_2, window_bounds = array<i64: 1, 128>}, {pipeline_mode = #tpu.pipeline_mode<synchronous>, transform_indices = @transform_3, window_bounds = array<i64: 128, 128>}, {pipeline_mode = #tpu.pipeline_mode<synchronous>, transform_indices = @transform_4, window_bounds = array<i64: 1, 128>}, {transform_indices = @transform_5, window_bounds = array<i64: 16, 128>}]} {
    %c0 = arith.constant 0 : index
    %c0_0 = arith.constant 0 : index
    %0 = vector.load %arg1[%c0, %c0_0] : memref<16x128xf32, #tpu.memory_space<vmem>>, vector<16x128xf32>
    %c0_1 = arith.constant 0 : index
    %c0_2 = arith.constant 0 : index
    %1 = vector.load %arg2[%c0_1, %c0_2] : memref<128x128xf32, #tpu.memory_space<vmem>>, vector<128x128xf32>
    %cst = arith.constant dense<0.000000e+00> : vector<16x128xf32>
    %2 = tpu.matmul %0, %1, %cst {dimension_numbers = #tpu.dot_dimension_numbers<[1], [0], [0], [1], [0, 0, 1, 1], [], []>} : vector<16x128xf32>, vector<128x128xf32>, vector<16x128xf32> -> vector<16x128xf32>
    %c0_3 = arith.constant 0 : index
    %c0_4 = arith.constant 0 : index
    %3 = vector.load %arg3[%c0_3, %c0_4] : memref<1x128xf32, #tpu.memory_space<vmem>>, vector<1x128xf32>
    %4 = vector.broadcast %3 : vector<1x128xf32> to vector<16x128xf32>
    %5 = arith.addf %2, %4 : vector<16x128xf32>
    %6 = arith.mulf %5, %5 : vector<16x128xf32>
    %cst_5 = arith.constant 5.000000e-01 : f32
    %7 = vector.broadcast %cst_5 : f32 to vector<16x128xf32>
    %8 = arith.mulf %7, %5 : vector<16x128xf32>
    %cst_6 = arith.constant 4.471500e-02 : f32
    %9 = vector.broadcast %cst_6 : f32 to vector<16x128xf32>
    %10 = arith.mulf %9, %6 : vector<16x128xf32>
    %cst_7 = arith.constant 1.000000e+00 : f32
    %11 = vector.broadcast %cst_7 : f32 to vector<16x128xf32>
    %12 = arith.addf %11, %10 : vector<16x128xf32>
    %13 = arith.mulf %5, %12 : vector<16x128xf32>
    %cst_8 = arith.constant 0.797884583 : f32
    %14 = vector.broadcast %cst_8 : f32 to vector<16x128xf32>
    %15 = arith.mulf %14, %13 : vector<16x128xf32>
    %16 = math.tanh %15 : vector<16x128xf32>
    %cst_9 = arith.constant 1.000000e+00 : f32
    %17 = vector.broadcast %cst_9 : f32 to vector<16x128xf32>
    %18 = arith.addf %17, %16 : vector<16x128xf32>
    %19 = arith.mulf %8, %18 : vector<16x128xf32>
    %c0_10 = arith.constant 0 : index
    %c0_11 = arith.constant 0 : index
    %20 = vector.load %arg4[%c0_10, %c0_11] : memref<128x128xf32, #tpu.memory_space<vmem>>, vector<128x128xf32>
    %cst_12 = arith.constant dense<0.000000e+00> : vector<16x128xf32>
    %21 = tpu.matmul %19, %20, %cst_12 {dimension_numbers = #tpu.dot_dimension_numbers<[1], [0], [0], [1], [0, 0, 1, 1], [], []>} : vector<16x128xf32>, vector<128x128xf32>, vector<16x128xf32> -> vector<16x128xf32>
    %c0_13 = arith.constant 0 : index
    %c0_14 = arith.constant 0 : index
    %22 = vector.load %arg5[%c0_13, %c0_14] : memref<1x128xf32, #tpu.memory_space<vmem>>, vector<1x128xf32>
    %23 = vector.broadcast %22 : vector<1x128xf32> to vector<16x128xf32>
    %24 = arith.addf %21, %23 : vector<16x128xf32>
    %c0_15 = arith.constant 0 : index
    %c0_16 = arith.constant 0 : index
    %25 = vector.load %arg6[%c0_15, %c0_16] : memref<16x128xf32, #tpu.memory_space<vmem>>, vector<16x128xf32>
    tpu.vector_store %arg6[%c0_15, %c0_16], %24 {strides = array<i32>} : memref<16x128xf32, #tpu.memory_space<vmem>>, vector<16x128xf32>,
    return
  }
  func.func @transform_0(%arg0: i32) -> (i32, i32) {
    %c0_i32 = arith.constant 0 : i32
    %c0_i32_0 = arith.constant 0 : i32
    return %arg0, %c0_i32 : i32, i32
  }
  func.func @transform_1(%arg0: i32) -> (i32, i32) {
    %c0_i32 = arith.constant 0 : i32
    %c0_i32_0 = arith.constant 0 : i32
    %c0_i32_1 = arith.constant 0 : i32
    return %c0_i32, %c0_i32_0 : i32, i32
  }
  func.func @transform_2(%arg0: i32) -> (i32, i32) {
    %c0_i32 = arith.constant 0 : i32
    %c0_i32_0 = arith.constant 0 : i32
    %c0_i32_1 = arith.constant 0 : i32
    return %c0_i32, %c0_i32_0 : i32, i32
  }
  func.func @transform_3(%arg0: i32) -> (i32, i32) {
    %c0_i32 = arith.constant 0 : i32
    %c0_i32_0 = arith.constant 0 : i32
    %c0_i32_1 = arith.constant 0 : i32
    return %c0_i32, %c0_i32_0 : i32, i32
  }
  func.func @transform_4(%arg0: i32) -> (i32, i32) {
    %c0_i32 = arith.constant 0 : i32
    %c0_i32_0 = arith.constant 0 : i32
    %c0_i32_1 = arith.constant 0 : i32
    return %c0_i32, %c0_i32_0 : i32, i32
  }
  func.func @transform_5(%arg0: i32) -> (i32, i32) {
    %c0_i32 = arith.constant 0 : i32
    %c0_i32_0 = arith.constant 0 : i32
    return %arg0, %c0_i32 : i32, i32
  }
}

</mosaic_0001>

<llo_original>
// kernel: tpu_custom_call.1
$region0: #{tpu_custom_call.1}
  #allocation0 [shape = 'u32[]', space=smem, size = 0x4, offset = 0x4, fixed_abs, tag = 'smem constant byte address 0x4 - core index']
  #allocation1 [shape = 'u32[144,128]{1,0:T(1,128)}', space=vmem, size = 0x12000, scoped, tag = 'internal scratch']
  %s0 = inlined_call_operand.hbm [shape: f32[16,128], index: 0, kind: input, shape index: {}]
  %s1 = inlined_call_operand.hbm [shape: f32[128,128], index: 1, kind: input, shape index: {}]
  %s2 = inlined_call_operand.vmem [shape: f32[1,128], index: 2, kind: input, shape index: {}]
  %s3 = inlined_call_operand.hbm [shape: f32[128,128], index: 3, kind: input, shape index: {}]
  %s4 = inlined_call_operand.vmem [shape: f32[1,128], index: 4, kind: input, shape index: {}]
  %s5 = inlined_call_operand.hbm [shape: f32[16,128], index: 5, kind: output, shape index: {}]
  %s6 = sld [smem:[#allocation0]]
  $region42: #{tpu_custom_call.1} parent=0
    _
  %s8 = ssub.s32 1, %s6
  %s9 = scalar_select 0, %s8, %s6
  $region1: #{tpu_custom_call.1} parent=0
    #allocation2 [shape = 'u8[8192]{0}', space=vmem, size = 0x2000, scoped, tag = 'input window, operand 0, single buffered']
    #allocation3 [shape = 's32[1]{0}', space=sflag, size = 0x4, scoped, tag = 'scoped memory for tpu_custom_call.1']
    #allocation4 [shape = 's32[1]{0}', space=sflag, size = 0x4, scoped, tag = 'scoped memory for tpu_custom_call.1']
    #allocation5 [shape = 'u8[65536]{0}', space=vmem, size = 0x10000, scoped, tag = 'input window, operand 1, single buffered']
    #allocation6 [shape = 's32[1]{0}', space=sflag, size = 0x4, scoped, tag = 'scoped memory for tpu_custom_call.1']
    #allocation7 [shape = 'u8[65536]{0}', space=vmem, size = 0x10000, scoped, tag = 'input window, operand 3, single buffered']
    #allocation8 [shape = 'u8[8192]{0}', space=vmem, size = 0x2000, scoped, tag = 'output window, operand 0, single buffered']
    %10 = vsyncpa [#allocation3], 0
    %11 = vsyncpa [#allocation6], 0
    %12 = vsyncpa [#allocation4], 0
    // Predicated region
    $region2: #{tpu_custom_call.1} parent=1 // pred_check
      _
    $region3: #{tpu_custom_call.1} parent=1 // pred_check_branch
      %14 = sbr.rel (0) target = $region5
    $region4: #{tpu_custom_call.1} parent=1 // pred_region
      %s16 = ssub.s32 256, 256
      %17 = vsyncadd [#allocation3], %s16
      %s18 = sshll.u32 [#allocation2], 4
      %s19 = int_to_ptr.vmem [resolvable:$true] %s18
      %24 = dma.hbm_to_vmem [thread:$0]  %s0, 256, %s19, [#allocation3], 128, 128, 8
    $region5: #{tpu_custom_call.1} parent=1 // pred_fallthru
      _
    // Predicated region
    $region6: #{tpu_custom_call.1} parent=1 // pred_check
      _
    $region7: #{tpu_custom_call.1} parent=1 // pred_check_branch
      %26 = sbr.rel (0) target = $region9
    $region8: #{tpu_custom_call.1} parent=1 // pred_region
      %s28 = ssub.s32 2048, 2048
      %29 = vsyncadd [#allocation6], %s28
      %s30 = sshll.u32 [#allocation5], 4
      %s31 = int_to_ptr.vmem [resolvable:$true] %s30
      %36 = dma.hbm_to_vmem [thread:$0]  %s1, 2048, %s31, [#allocation6], 128, 128, 8
    $region9: #{tpu_custom_call.1} parent=1 // pred_fallthru
      _
    // Predicated region
    $region10: #{tpu_custom_call.1} parent=1 // pred_check
      _
    $region11: #{tpu_custom_call.1} parent=1 // pred_check_branch
      %38 = sbr.rel (0) target = $region13
    $region12: #{tpu_custom_call.1} parent=1 // pred_region
      _
    $region13: #{tpu_custom_call.1} parent=1 // pred_fallthru
      _
    // Predicated region
    $region14: #{tpu_custom_call.1} parent=1 // pred_check
      _
    $region15: #{tpu_custom_call.1} parent=1 // pred_check_branch
      %40 = sbr.rel (0) target = $region17
    $region16: #{tpu_custom_call.1} parent=1 // pred_region
      %s42 = ssub.s32 2048, 2048
      %43 = vsyncadd [#allocation6], %s42
      %s44 = sshll.u32 [#allocation7], 4
      %s45 = int_to_ptr.vmem [resolvable:$true] %s44
      %50 = dma.hbm_to_vmem [thread:$0]  %s3, 2048, %s45, [#allocation6], 128, 128, 8
    $region17: #{tpu_custom_call.1} parent=1 // pred_fallthru
      _
    // Predicated region
    $region18: #{tpu_custom_call.1} parent=1 // pred_check
      _
    $region19: #{tpu_custom_call.1} parent=1 // pred_check_branch
      %52 = sbr.rel (0) target = $region21
    $region20: #{tpu_custom_call.1} parent=1 // pred_region
      _
    $region21: #{tpu_custom_call.1} parent=1 // pred_fallthru
      _
    // Predicated region
    $region22: #{tpu_custom_call.1} parent=1 // pred_check
      _
    $region23: #{tpu_custom_call.1} parent=1 // pred_check_branch
      %54 = sbr.rel (0) target = $region25
    $region24: #{tpu_custom_call.1} parent=1 // pred_region
      %55 = dma.done [#allocation3], 256
    $region25: #{tpu_custom_call.1} parent=1 // pred_fallthru
      _
    // Predicated region
    $region26: #{tpu_custom_call.1} parent=1 // pred_check
      _
    $region27: #{tpu_custom_call.1} parent=1 // pred_check_branch
      %57 = sbr.rel (0) target = $region29
    $region28: #{tpu_custom_call.1} parent=1 // pred_region
      %58 = dma.done [#allocation6], 2048
    $region29: #{tpu_custom_call.1} parent=1 // pred_fallthru
      _
    // Predicated region
    $region30: #{tpu_custom_call.1} parent=1 // pred_check
      _
    $region31: #{tpu_custom_call.1} parent=1 // pred_check_branch
      %60 = sbr.rel (0) target = $region33
    $region32: #{tpu_custom_call.1} parent=1 // pred_region
      %61 = dma.done [#allocation6], 2048
    $region33: #{tpu_custom_call.1} parent=1 // pred_fallthru
      _
    %v62 = vld [vmem:[#allocation2] sm:$0xff]
    %v63 = vld [vmem:[#allocation2 + $0x8] sm:$0xff]
    %v64 = vld [vmem:[#allocation5] sm:$0xff]
    %v65 = vld [vmem:[#allocation5 + $0x8] sm:$0xff]
    %v66 = vld [vmem:[#allocation5 + $0x10] sm:$0xff]
    %v67 = vld [vmem:[#allocation5 + $0x18] sm:$0xff]
    %v68 = vld [vmem:[#allocation5 + $0x20] sm:$0xff]
    %v69 = vld [vmem:[#allocation5 + $0x28] sm:$0xff]
    %v70 = vld [vmem:[#allocation5 + $0x30] sm:$0xff]
    %v71 = vld [vmem:[#allocation5 + $0x38] sm:$0xff]
    %v72 = vld [vmem:[#allocation5 + $0x40] sm:$0xff]
    %v73 = vld [vmem:[#allocation5 + $0x48] sm:$0xff]
    %v74 = vld [vmem:[#allocation5 + $0x50] sm:$0xff]
    %v75 = vld [vmem:[#allocation5 + $0x58] sm:$0xff]
    %v76 = vld [vmem:[#allocation5 + $0x60] sm:$0xff]
    %v77 = vld [vmem:[#allocation5 + $0x68] sm:$0xff]
    %v78 = vld [vmem:[#allocation5 + $0x70] sm:$0xff]
    %v79 = vld [vmem:[#allocation5 + $0x78] sm:$0xff]
    %v80 = vld [vmem:[%s2] sm:$0x1]
    %v82 = vlaneseq
    %v83 = vshrl.u32 %v82, 7
    %v84 = vsub.s32 0, %v83
    %v85 = vrot.slane %v80, %v84
    %87 = vmatprep.subr.mxu0 0.0
    %88 = vmatpush1.msra.mxu0 %v64
    %89 = vmatprep.subr.mxu0 0.0
    %90 = vmatpush1.msra.mxu0 %v65
    %91 = vmatprep.subr.mxu0 0.0
    %92 = vmatpush1.msra.mxu0 %v66
    %93 = vmatprep.subr.mxu0 0.0
    %94 = vmatpush1.msra.mxu0 %v67
    %95 = vmatprep.subr.mxu0 0.0
    %96 = vmatpush1.msra.mxu0 %v68
    %97 = vmatprep.subr.mxu0 0.0
    %98 = vmatpush1.msra.mxu0 %v69
    %99 = vmatprep.subr.mxu0 0.0
    %100 = vmatpush1.msra.mxu0 %v70
    %101 = vmatprep.subr.mxu0 0.0
    %102 = vmatpush1.msra.mxu0 %v71
    %103 = vmatprep.subr.mxu0 0.0
    %104 = vmatpush1.msra.mxu0 %v72
    %105 = vmatprep.subr.mxu0 0.0
    %106 = vmatpush1.msra.mxu0 %v73
    %107 = vmatprep.subr.mxu0 0.0
    %108 = vmatpush1.msra.mxu0 %v74
    %109 = vmatprep.subr.mxu0 0.0
    %110 = vmatpush1.msra.mxu0 %v75
    %111 = vmatprep.subr.mxu0 0.0
    %112 = vmatpush1.msra.mxu0 %v76
    %113 = vmatprep.subr.mxu0 0.0
    %114 = vmatpush1.msra.mxu0 %v77
    %115 = vmatprep.subr.mxu0 0.0
    %116 = vmatpush1.msra.mxu0 %v78
    %117 = vmatprep.subr.mxu0 0.0
    %118 = vmatpush1.msra.mxu0 %v79
    %119 = vmatprep.subr.mxu0 0.0
    %120 = vmatpush1.msra.mxu0 0.0
    %121 = vmatprep.subr.mxu0 0.0
    %122 = vmatpush1.msra.mxu0 0.0
    %123 = vmatprep.subr.mxu0 0.0
    %124 = vmatpush1.msra.mxu0 0.0
    %125 = vmatprep.subr.mxu0 0.0
    %126 = vmatpush1.msra.mxu0 0.0
    %127 = vmatprep.subr.mxu0 0.0
    %128 = vmatpush1.msra.mxu0 0.0
    %129 = vmatprep.subr.mxu0 0.0
    %130 = vmatpush1.msra.mxu0 0.0
    %131 = vmatprep.subr.mxu0 0.0
    %132 = vmatpush1.msra.mxu0 0.0
    %133 = vmatprep.subr.mxu0 0.0
    %134 = vmatpush1.msra.mxu0 0.0
    %135 = vmatprep.subr.mxu0 0.0
    %136 = vmatpush1.msra.mxu0 0.0
    %137 = vmatprep.subr.mxu0 0.0
    %138 = vmatpush1.msra.mxu0 0.0
    %139 = vmatprep.subr.mxu0 0.0
    %140 = vmatpush1.msra.mxu0 0.0
    %141 = vmatprep.subr.mxu0 0.0
    %142 = vmatpush1.msra.mxu0 0.0
    %143 = vmatprep.subr.mxu0 0.0
    %144 = vmatpush1.msra.mxu0 0.0
    %145 = vmatprep.subr.mxu0 0.0
    %146 = vmatpush1.msra.mxu0 0.0
    %147 = vmatprep.subr.mxu0 0.0
    %148 = vmatpush1.msra.mxu0 0.0
    %149 = vmatprep.subr.mxu0 0.0
    %150 = vmatpush1.msra.mxu0 0.0
    %151 = vmatprep.mubr.f32.mxu0 0.0
    %152 = vmatmul.mubr.f32.gmra.mrb[0].mxu0 %v62
    %v153 = vpop.f32.mrb[0].mxu0
    %v154 = vadd.f32 %v85, %v153
    %v155 = vpop.f32.mrb[0].mxu0
    %156 = vmatprep.mubr.f32.mxu0 0.0
    %157 = vmatmul.mubr.f32.gmra.mrb[0].mxu0 %v63
    %v158 = vpop.f32.mrb[0].mxu0
    %v159 = vadd.f32 %v85, %v158
    %v160 = vpop.f32.mrb[0].mxu0
    %161 = vdwg.mxu0
    %v162 = vmul.f32 %v154, %v154
    %v163 = vmul.f32 %v159, %v159
    %v164 = vmul.f32 %v154, 0.5
    %v165 = vmul.f32 %v159, 0.5
    %v166 = vmul.f32 %v162, 0.044715
    %v167 = vmul.f32 %v163, 0.044715
    %v168 = vadd.f32 %v166, 1.0
    %v169 = vadd.f32 %v167, 1.0
    %v170 = vmul.f32 %v154, %v168
    %v171 = vmul.f32 %v159, %v169
    %v172 = vmul.f32 %v170, 0.7978846
    %v173 = vmul.f32 %v171, 0.7978846
    %v174 = vtanh.pop %v172
    %v175 = vtanh.pop %v173
    %v176 = vadd.f32 %v174, 1.0
    %v177 = vadd.f32 %v175, 1.0
    %v178 = vmul.f32 %v164, %v176
    %v179 = vmul.f32 %v165, %v177
    %v180 = vld [vmem:[#allocation7] sm:$0xff]
    %v181 = vld [vmem:[#allocation7 + $0x8] sm:$0xff]
    %v182 = vld [vmem:[#allocation7 + $0x10] sm:$0xff]
    %v183 = vld [vmem:[#allocation7 + $0x18] sm:$0xff]
    %v184 = vld [vmem:[#allocation7 + $0x20] sm:$0xff]
    %v185 = vld [vmem:[#allocation7 + $0x28] sm:$0xff]
    %v186 = vld [vmem:[#allocation7 + $0x30] sm:$0xff]
    %v187 = vld [vmem:[#allocation7 + $0x38] sm:$0xff]
    %v188 = vld [vmem:[#allocation7 + $0x40] sm:$0xff]
    %v189 = vld [vmem:[#allocation7 + $0x48] sm:$0xff]
    %v190 = vld [vmem:[#allocation7 + $0x50] sm:$0xff]
    %v191 = vld [vmem:[#allocation7 + $0x58] sm:$0xff]
    %v192 = vld [vmem:[#allocation7 + $0x60] sm:$0xff]
    %v193 = vld [vmem:[#allocation7 + $0x68] sm:$0xff]
    %v194 = vld [vmem:[#allocation7 + $0x70] sm:$0xff]
    %v195 = vld [vmem:[#allocation7 + $0x78] sm:$0xff]
    %v196 = vld [vmem:[%s4] sm:$0x1]
    %v198 = vlaneseq
    %v199 = vshrl.u32 %v198, 7
    %v200 = vsub.s32 0, %v199
    %v201 = vrot.slane %v196, %v200
    %203 = vmatprep.subr.mxu0 0.0
    %204 = vmatpush1.msra.mxu0 %v180
    %205 = vmatprep.subr.mxu0 0.0
    %206 = vmatpush1.msra.mxu0 %v181
    %207 = vmatprep.subr.mxu0 0.0
    %208 = vmatpush1.msra.mxu0 %v182
    %209 = vmatprep.subr.mxu0 0.0
    %210 = vmatpush1.msra.mxu0 %v183
    %211 = vmatprep.subr.mxu0 0.0
    %212 = vmatpush1.msra.mxu0 %v184
    %213 = vmatprep.subr.mxu0 0.0
    %214 = vmatpush1.msra.mxu0 %v185
    %215 = vmatprep.subr.mxu0 0.0
    %216 = vmatpush1.msra.mxu0 %v186
    %217 = vmatprep.subr.mxu0 0.0
    %218 = vmatpush1.msra.mxu0 %v187
    %219 = vmatprep.subr.mxu0 0.0
    %220 = vmatpush1.msra.mxu0 %v188
    %221 = vmatprep.subr.mxu0 0.0
    %222 = vmatpush1.msra.mxu0 %v189
    %223 = vmatprep.subr.mxu0 0.0
    %224 = vmatpush1.msra.mxu0 %v190
    %225 = vmatprep.subr.mxu0 0.0
    %226 = vmatpush1.msra.mxu0 %v191
    %227 = vmatprep.subr.mxu0 0.0
    %228 = vmatpush1.msra.mxu0 %v192
    %229 = vmatprep.subr.mxu0 0.0
    %230 = vmatpush1.msra.mxu0 %v193
    %231 = vmatprep.subr.mxu0 0.0
    %232 = vmatpush1.msra.mxu0 %v194
    %233 = vmatprep.subr.mxu0 0.0
    %234 = vmatpush1.msra.mxu0 %v195
    %235 = vmatprep.subr.mxu0 0.0
    %236 = vmatpush1.msra.mxu0 0.0
    %237 = vmatprep.subr.mxu0 0.0
    %238 = vmatpush1.msra.mxu0 0.0
    %239 = vmatprep.subr.mxu0 0.0
    %240 = vmatpush1.msra.mxu0 0.0
    %241 = vmatprep.subr.mxu0 0.0
    %242 = vmatpush1.msra.mxu0 0.0
    %243 = vmatprep.subr.mxu0 0.0
    %244 = vmatpush1.msra.mxu0 0.0
    %245 = vmatprep.subr.mxu0 0.0
    %246 = vmatpush1.msra.mxu0 0.0
    %247 = vmatprep.subr.mxu0 0.0
    %248 = vmatpush1.msra.mxu0 0.0
    %249 = vmatprep.subr.mxu0 0.0
    %250 = vmatpush1.msra.mxu0 0.0
    %251 = vmatprep.subr.mxu0 0.0
    %252 = vmatpush1.msra.mxu0 0.0
    %253 = vmatprep.subr.mxu0 0.0
    %254 = vmatpush1.msra.mxu0 0.0
    %255 = vmatprep.subr.mxu0 0.0
    %256 = vmatpush1.msra.mxu0 0.0
    %257 = vmatprep.subr.mxu0 0.0
    %258 = vmatpush1.msra.mxu0 0.0
    %259 = vmatprep.subr.mxu0 0.0
    %260 = vmatpush1.msra.mxu0 0.0
    %261 = vmatprep.subr.mxu0 0.0
    %262 = vmatpush1.msra.mxu0 0.0
    %263 = vmatprep.subr.mxu0 0.0
    %264 = vmatpush1.msra.mxu0 0.0
    %265 = vmatprep.subr.mxu0 0.0
    %266 = vmatpush1.msra.mxu0 0.0
    %267 = vmatprep.mubr.f32.mxu0 0.0
    %268 = vmatmul.mubr.f32.gmra.mrb[0].mxu0 %v178
    %v269 = vpop.f32.mrb[0].mxu0
    %v270 = vadd.f32 %v201, %v269
    %v271 = vpop.f32.mrb[0].mxu0
    %272 = vmatprep.mubr.f32.mxu0 0.0
    %273 = vmatmul.mubr.f32.gmra.mrb[0].mxu0 %v179
    %v274 = vpop.f32.mrb[0].mxu0
    %v275 = vadd.f32 %v201, %v274
    %v276 = vpop.f32.mrb[0].mxu0
    %277 = vdwg.mxu0
    %278 = vst [vmem:[#allocation8] sm:$0xff] %v270
    %279 = vst [vmem:[#allocation8 + $0x8] sm:$0xff] %v275
    // Predicated region
    $region34: #{tpu_custom_call.1} parent=1 // pred_check
      _
    $region35: #{tpu_custom_call.1} parent=1 // pred_check_branch
      %281 = sbr.rel (0) target = $region37
    $region36: #{tpu_custom_call.1} parent=1 // pred_region
      %s283 = ssub.s32 256, 256
      %284 = vsyncadd [#allocation4], %s283
      %s285 = sshll.u32 [#allocation8], 4
      %s286 = int_to_ptr.vmem [resolvable:$true] %s285
      %291 = dma.vmem_to_hbm [thread:$0]  %s286, 256, %s5, [#allocation4], 128, 128, 8
    $region37: #{tpu_custom_call.1} parent=1 // pred_fallthru
      _
    // Predicated region
    $region38: #{tpu_custom_call.1} parent=1 // pred_check
      _
    $region39: #{tpu_custom_call.1} parent=1 // pred_check_branch
      %293 = sbr.rel (0) target = $region41
    $region40: #{tpu_custom_call.1} parent=1 // pred_region
      %294 = dma.done [#allocation4], 256
    $region41: #{tpu_custom_call.1} parent=1 // pred_fallthru
      _
    %295 = vsyncpa [#allocation3], 1
    %296 = vsyncpa [#allocation6], 1
    %297 = vsyncpa [#allocation4], 1

</llo_original>
